<compile_context>
chip_gen: v5e
topology: v5e:2x2
jax: 0.10.0
libtpu: 0.0.40
codegen_flags: <defaults>
</compile_context>

<pallas_src>
import functools

import jax
import jax.numpy as jnp
from jax.experimental import pallas as pl
from jax.experimental.pallas import tpu as pltpu


def _round_up(x, m):
    return (x + m - 1) // m * m


def _cdiv(a, b):
    return (a + b - 1) // b


def _linear_kernel(x_ref, w_ref, b_ref, o_ref):
    # x_ref: (TM, in_dim), w_ref: (in_dim, out_pad), b_ref: (1, out_pad)
    acc = jnp.dot(
        x_ref[...],
        w_ref[...],
        preferred_element_type=jnp.float32,
        precision=jax.lax.Precision.HIGHEST,
    )
    o_ref[...] = (acc + b_ref[...]).astype(o_ref.dtype)


def prepare_linear_params(w, b):
    """One-time parameter prep (keep OUTSIDE the per-call hot path).

    w: (out_dim, in_dim)  -- PyTorch nn.Linear layout
    b: (out_dim,)
    Returns (w_t_padded, b_padded) with shapes (in_dim, out_pad), (1, out_pad)
    where out_pad = round_up(out_dim, 128) so the kernel's output stores are
    lane-dense.  Padding columns are zero, so they never affect real outputs.
    """
    out_dim, in_dim = w.shape
    out_pad = _round_up(out_dim, 128)
    wt = jnp.zeros((in_dim, out_pad), w.dtype).at[:, :out_dim].set(w.T)
    b2 = jnp.zeros((1, out_pad), b.dtype).at[:, :out_dim].set(b)
    return wt, b2


@functools.partial(jax.jit, static_argnames=("out_dim", "block_rows"))
def linear_norm_prepared(x, wt, b2, *, out_dim, block_rows=1024):
    """LinearNorm forward with pre-transposed / lane-padded params.

    x:  (..., in_dim)
    wt: (in_dim, out_pad)   from prepare_linear_params
    b2: (1, out_pad)        from prepare_linear_params
    returns (..., out_dim)
    """
    in_dim = x.shape[-1]
    out_pad = wt.shape[1]
    lead = x.shape[:-1]

    x2 = x.reshape(-1, in_dim)
    m = x2.shape[0]
    itemsize = jnp.dtype(x.dtype).itemsize

    # --- Row-tile selection ---------------------------------------------
    # Keep tm a multiple of 8 (sublane), minimize padding, and cap it so the
    # double-buffered x/out tiles stay within a conservative ~16 MiB VMEM
    # budget (fits every generation, incl. v7x's 64 MiB physical VMEM).
    block_rows = _round_up(max(int(block_rows), 8), 8)
    tile_budget = 16 * 1024 * 1024
    max_tm = max(
        (tile_budget // (2 * 2 * (in_dim + out_pad) * itemsize)) // 8 * 8, 8
    )
    block_rows = min(block_rows, max_tm)

    ntiles = max(_cdiv(m, block_rows), 1)
    if ntiles == 1 and m > 8:
        # >= 2 grid steps: shards across both v7x TensorCores and enables
        # prefetch/compute overlap; harmless on single-TC v5e/v6e.
        ntiles = 2
    tm = _round_up(_cdiv(m, ntiles), 8)
    ntiles = _cdiv(m, tm)
    m_pad = ntiles * tm

    if m_pad != m:  # only pay the pad pass when actually needed
        x2 = jnp.pad(x2, ((0, m_pad - m), (0, 0)))

    # --- VMEM budget hint -------------------------------------------------
    # resident weight+bias (double-buffered by default) + x/out double buffers
    w_bytes = wt.size * jnp.dtype(wt.dtype).itemsize
    b_bytes = b2.size * jnp.dtype(b2.dtype).itemsize
    tiles_bytes = 2 * 2 * tm * (in_dim + out_pad) * itemsize
    vmem_limit = int(
        min(max(2 * (w_bytes + b_bytes) + tiles_bytes + (4 << 20), 32 << 20),
            64 << 20)
    )

    out = pl.pallas_call(
        _linear_kernel,
        out_shape=jax.ShapeDtypeStruct((m_pad, out_pad), x.dtype),
        grid_spec=pltpu.PrefetchScalarGridSpec(
            num_scalar_prefetch=0,
            grid=(ntiles,),
            in_specs=[
                pl.BlockSpec((tm, in_dim), lambda i: (i, 0)),        # x row tile
                pl.BlockSpec((in_dim, out_pad), lambda i: (0, 0)),   # weight (resident)
                pl.BlockSpec((1, out_pad), lambda i: (0, 0)),        # bias (resident)
            ],
            out_specs=pl.BlockSpec((tm, out_pad), lambda i: (i, 0)),  # lane-dense
        ),
        compiler_params=pltpu.CompilerParams(
            dimension_semantics=("parallel",),
            vmem_limit_bytes=vmem_limit,
        ),
    )(x2, wt, b2)

    if m_pad != m or out_pad != out_dim:
        out = out[:m, :out_dim]
    return out.reshape(*lead, out_dim)


def linear_norm(x, w, b, *, block_rows=1024):
    """Convenience one-shot API (PyTorch layout weights).

    For repeated calls, call prepare_linear_params(w, b) once and reuse
    linear_norm_prepared to avoid re-doing the transpose/pad each call.
    """
    wt, b2 = prepare_linear_params(w, b)
    return linear_norm_prepared(
        x, wt, b2, out_dim=w.shape[0], block_rows=block_rows
    )


if __name__ == "__main__":
    B, T, D_in, D_out = 2, 8, 32, 32

    key = jax.random.PRNGKey(0)
    kx, kw, kb = jax.random.split(key, 3)

    x = jax.random.normal(kx, (B, T, D_in), jnp.float32)

    # torch.nn.Linear stores W as (out_dim, in_dim); xavier_uniform_ with
    # gain = calculate_gain('linear') = 1.0.
    limit = (6.0 / (D_in + D_out)) ** 0.5
    w = jax.random.uniform(kw, (D_out, D_in), jnp.float32, -limit, limit)
    blim = 1.0 / (D_in ** 0.5)
    b = jax.random.uniform(kb, (D_out,), jnp.float32, -blim, blim)

    # One-time param prep (outside the hot path), then the Pallas forward.
    wt, b2 = prepare_linear_params(w, b)
    out = linear_norm_prepared(x, wt, b2, out_dim=D_out)
    jax.block_until_ready(out)

    assert out.shape == (B, T, D_out), out.shape

    # Pure-JAX reference: y = x @ W^T + b
    ref = x @ w.T + b
    max_err = jnp.max(jnp.abs(out - ref))
    assert bool(max_err < 1e-4), f"mismatch vs reference: {max_err}"
    assert bool(jnp.all(jnp.isfinite(out))), "non-finite output"

    # Also exercise the convenience wrapper once.
    out2 = linear_norm(x, w, b)
    jax.block_until_ready(out2)
    assert bool(jnp.max(jnp.abs(out2 - ref)) < 1e-4)

    print("KERNEL_OK")
</pallas_src>

<mosaic_0001>
module attributes {stable_mosaic.version = 11 : i64} {
  func.func @_linear_kernel(%arg0: i32, %arg1: memref<8x32xf32, #tpu.memory_space<vmem>>, %arg2: memref<32x128xf32, #tpu.memory_space<vmem>>, %arg3: memref<1x128xf32, #tpu.memory_space<vmem>>, %arg4: memref<8x128xf32, #tpu.memory_space<vmem>>) attributes {dimension_semantics = [#tpu.dimension_semantics<parallel>], iteration_bounds = array<i64: 2>, scalar_prefetch = 0 : i64, scratch_operands = 0 : i64, tpu.core_type = #tpu.core_type<tc>, window_params = [{transform_indices = @transform_0, window_bounds = array<i64: 8, 32>}, {pipeline_mode = #tpu.pipeline_mode<synchronous>, transform_indices = @transform_1, window_bounds = array<i64: 32, 128>}, {pipeline_mode = #tpu.pipeline_mode<synchronous>, transform_indices = @transform_2, window_bounds = array<i64: 1, 128>}, {transform_indices = @transform_3, window_bounds = array<i64: 8, 128>}]} {
    %c0 = arith.constant 0 : index
    %c0_0 = arith.constant 0 : index
    %0 = vector.load %arg1[%c0, %c0_0] : memref<8x32xf32, #tpu.memory_space<vmem>>, vector<8x32xf32>
    %c0_1 = arith.constant 0 : index
    %c0_2 = arith.constant 0 : index
    %1 = vector.load %arg2[%c0_1, %c0_2] : memref<32x128xf32, #tpu.memory_space<vmem>>, vector<32x128xf32>
    %cst = arith.constant dense<0.000000e+00> : vector<8x128xf32>
    %2 = tpu.matmul %0, %1, %cst {dimension_numbers = #tpu.dot_dimension_numbers<[1], [0], [0], [1], [0, 0, 1, 1], [], []>, precision = #tpu.contract_precision<fp32>} : vector<8x32xf32>, vector<32x128xf32>, vector<8x128xf32> -> vector<8x128xf32>
    %c0_3 = arith.constant 0 : index
    %c0_4 = arith.constant 0 : index
    %3 = vector.load %arg3[%c0_3, %c0_4] : memref<1x128xf32, #tpu.memory_space<vmem>>, vector<1x128xf32>
    %4 = vector.broadcast %3 : vector<1x128xf32> to vector<8x128xf32>
    %5 = arith.addf %2, %4 : vector<8x128xf32>
    %c0_5 = arith.constant 0 : index
    %c0_6 = arith.constant 0 : index
    %6 = vector.load %arg4[%c0_5, %c0_6] : memref<8x128xf32, #tpu.memory_space<vmem>>, vector<8x128xf32>
    tpu.vector_store %arg4[%c0_5, %c0_6], %5 {strides = array<i32>} : memref<8x128xf32, #tpu.memory_space<vmem>>, vector<8x128xf32>,
    return
  }
  func.func @transform_0(%arg0: i32) -> (i32, i32) {
    %c0_i32 = arith.constant 0 : i32
    %c0_i32_0 = arith.constant 0 : i32
    return %arg0, %c0_i32 : i32, i32
  }
  func.func @transform_1(%arg0: i32) -> (i32, i32) {
    %c0_i32 = arith.constant 0 : i32
    %c0_i32_0 = arith.constant 0 : i32
    %c0_i32_1 = arith.constant 0 : i32
    return %c0_i32, %c0_i32_0 : i32, i32
  }
  func.func @transform_2(%arg0: i32) -> (i32, i32) {
    %c0_i32 = arith.constant 0 : i32
    %c0_i32_0 = arith.constant 0 : i32
    %c0_i32_1 = arith.constant 0 : i32
    return %c0_i32, %c0_i32_0 : i32, i32
  }
  func.func @transform_3(%arg0: i32) -> (i32, i32) {
    %c0_i32 = arith.constant 0 : i32
    %c0_i32_0 = arith.constant 0 : i32
    return %arg0, %c0_i32 : i32, i32
  }
}

</mosaic_0001>

<llo_original>
// kernel: linear_norm_prepared.1
$region0: #{linear_norm_prepared.1}
  #allocation0 [shape = 'u32[]', space=smem, size = 0x4, offset = 0x4, fixed_abs, tag = 'smem constant byte address 0x4 - core index']
  #allocation1 [shape = 'u32[72,128]{1,0:T(1,128)}', space=vmem, size = 0x9000, scoped, tag = 'internal scratch']
  %s0 = inlined_call_operand.hbm [shape: f32[16,32], index: 0, kind: input, shape index: {}]
  %s1 = inlined_call_operand.hbm [shape: f32[32,128], index: 1, kind: input, shape index: {}]
  %s2 = inlined_call_operand.vmem [shape: f32[1,128], index: 2, kind: input, shape index: {}]
  %s3 = inlined_call_operand.vmem [shape: f32[16,128], index: 3, kind: output, shape index: {}]
  %s4 = sld [smem:[#allocation0]]
  $region53: #{linear_norm_prepared.1} parent=0
    _
  %s6 = ssub.s32 1, %s4
  %s7 = scalar_select 0, %s6, %s4
  $region1: #{linear_norm_prepared.1} parent=0
    #allocation2 [shape = 'u8[8192]{0}', space=vmem, size = 0x2000, scoped, tag = 'input window, operand 0']
    #allocation3 [shape = 's32[2]{0}', space=sflag, size = 0x8, scoped, tag = 'scoped memory for linear_norm_prepared.1']
    #allocation4 [shape = 'u8[16384]{0}', space=vmem, size = 0x4000, scoped, tag = 'input window, operand 1, single buffered']
    #allocation5 [shape = 's32[1]{0}', space=sflag, size = 0x4, scoped, tag = 'scoped memory for linear_norm_prepared.1']
    %8 = vsyncpa [#allocation3], 0
    %s9 = scalar_lea.sflag [#allocation3], 1
    %10 = vsyncpa %s9, 0
    %11 = vsyncpa [#allocation5], 0
    loop: start=0, step=1, limit=4
    $region2: #{linear_norm_prepared.1} parent=1 // loop_pre_header
      _
    $region3: #{linear_norm_prepared.1} parent=1 // loop_header
      %s13 = sphi 0, %s17
      %p14 = scmp.ge.s32.totalorder %s13, 4
      %s23 = sphi 0, %s25
      %s26 = sphi 0, %s23
      %s27 = sphi 0, %s26
      %s43 = sphi 0, %s27
      %s47 = sphi 0, %s47
      %s49 = sphi 0, %s47
      %s50 = sphi 0, %s49
      %s64 = sphi 0, %s50
      %s68 = sphi 0, %s68
      %s70 = sphi 0, %s68
      %s71 = sphi 0, %s70
      %s85 = sphi 0, %s71
      %s91 = sphi 0, %s93
      %s94 = sphi 0, %s91
      %s95 = sphi 0, %s94
      %s111 = sphi 0, %s95
    $region4: #{linear_norm_prepared.1} parent=1 // loop_header_branch
      %16 = sbr.rel (%p14) target = $region8
    $region5: #{linear_norm_prepared.1} parent=1 // loop_body
      %s18 = ssub.s32 %s13, 1
      %s19 = ssub.s32 %s13, 2
      %s20 = sadd.s32 %s13, 1
      %s21 = ssub.s32 %s13, %s20
      %p22 = scmp.eq.s32.totalorder %s21, 0
      %s24 = sadd.s32 %s23, 1
      %s25 = scalar_select %p22, %s23, %s24
      %p28 = pneg %p22
      %p29 = scmp.eq.s32.totalorder %s13, 1
      %p30 = por %p28, %p29
      %p31 = scmp.ne.s32.totalorder %s23, %s26
      %p32 = scmp.eq.s32.totalorder %s13, 0
      %p33 = por %p31, %p32
      %p34 = scmp.ne.s32.totalorder %s23, %s26
      %p35 = scmp.eq.s32.totalorder %s18, 1
      %p36 = por %p34, %p35
      %p37 = scmp.ne.s32.totalorder %s26, %s27
      %p38 = scmp.eq.s32.totalorder %s18, 0
      %p39 = por %p37, %p38
      %p40 = scmp.ne.s32.totalorder %s26, %s27
      %p41 = scmp.eq.s32.totalorder %s19, 1
      %p42 = por %p40, %p41
      %p44 = scmp.ne.s32.totalorder %s27, %s43
      %p45 = scmp.eq.s32.totalorder %s19, 0
      %p46 = por %p44, %p45
      %s48 = sadd.s32 %s47, 1
      %p51 = scmp.eq.s32.totalorder %s13, 1
      %p52 = scmp.ne.s32.totalorder %s47, %s49
      %p53 = scmp.eq.s32.totalorder %s13, 0
      %p54 = por %p52, %p53
      %p55 = scmp.ne.s32.totalorder %s47, %s49
      %p56 = scmp.eq.s32.totalorder %s18, 1
      %p57 = por %p55, %p56
      %p58 = scmp.ne.s32.totalorder %s49, %s50
      %p59 = scmp.eq.s32.totalorder %s18, 0
      %p60 = por %p58, %p59
      %p61 = scmp.ne.s32.totalorder %s49, %s50
      %p62 = scmp.eq.s32.totalorder %s19, 1
      %p63 = por %p61, %p62
      %p65 = scmp.ne.s32.totalorder %s50, %s64
      %p66 = scmp.eq.s32.totalorder %s19, 0
      %p67 = por %p65, %p66
      %s69 = sadd.s32 %s68, 1
      %p72 = scmp.eq.s32.totalorder %s13, 1
      %p73 = scmp.ne.s32.totalorder %s68, %s70
      %p74 = scmp.eq.s32.totalorder %s13, 0
      %p75 = por %p73, %p74
      %p76 = scmp.ne.s32.totalorder %s68, %s70
      %p77 = scmp.eq.s32.totalorder %s18, 1
      %p78 = por %p76, %p77
      %p79 = scmp.ne.s32.totalorder %s70, %s71
      %p80 = scmp.eq.s32.totalorder %s18, 0
      %p81 = por %p79, %p80
      %p82 = scmp.ne.s32.totalorder %s70, %s71
      %p83 = scmp.eq.s32.totalorder %s19, 1
      %p84 = por %p82, %p83
      %p86 = scmp.ne.s32.totalorder %s71, %s85
      %p87 = scmp.eq.s32.totalorder %s19, 0
      %p88 = por %p86, %p87
      %s89 = ssub.s32 %s13, %s20
      %p90 = scmp.eq.s32.totalorder %s89, 0
      %s92 = sadd.s32 %s91, 1
      %s93 = scalar_select %p90, %s91, %s92
      %p96 = pneg %p90
      %p97 = scmp.eq.s32.totalorder %s13, 1
      %p98 = por %p96, %p97
      %p99 = scmp.ne.s32.totalorder %s91, %s94
      %p100 = scmp.eq.s32.totalorder %s13, 0
      %p101 = por %p99, %p100
      %p102 = scmp.ne.s32.totalorder %s91, %s94
      %p103 = scmp.eq.s32.totalorder %s18, 1
      %p104 = por %p102, %p103
      %p105 = scmp.ne.s32.totalorder %s94, %s95
      %p106 = scmp.eq.s32.totalorder %s18, 0
      %p107 = por %p105, %p106
      %p108 = scmp.ne.s32.totalorder %s94, %s95
      %p109 = scmp.eq.s32.totalorder %s19, 1
      %p110 = por %p108, %p109
      %p112 = scmp.ne.s32.totalorder %s95, %s111
      %p113 = scmp.eq.s32.totalorder %s19, 0
      %p114 = por %p112, %p113
      %p115 = scmp.le.s32.totalorder 1, %s13
      %p116 = scmp.lt.s32.totalorder %s13, 3
      %p117 = pnand %p115, %p116
      %p118 = pneg %p117
      // Predicated region
      $region9: #{linear_norm_prepared.1} parent=5 // pred_check
        _
      $region10: #{linear_norm_prepared.1} parent=5 // pred_check_branch
        %120 = sbr.rel (%p117) target = $region12
      $region11: #{linear_norm_prepared.1} parent=5 // pred_region
        %s121 = ssub.s32 %s13, 1
        // Predicated region
        $region13: #{linear_norm_prepared.1} parent=11 // pred_check
          %p122 = pneg %p60
        $region14: #{linear_norm_prepared.1} parent=11 // pred_check_branch
          %124 = sbr.rel (%p122) target = $region16
        $region15: #{linear_norm_prepared.1} parent=11 // pred_region
          %126 = vsyncadd [#allocation5], 0
          %s127 = sshll.u32 %s1, 4
          %s128 = int_to_ptr.hbm [resolvable:$true] %s127
          %s129 = sshll.u32 [#allocation4], 4
          %s130 = int_to_ptr.vmem [resolvable:$true] %s129
          %135 = dma.hbm_to_vmem [thread:$0]  %s128, 512, %s130, [#allocation5], 128, 128, 8
        $region16: #{linear_norm_prepared.1} parent=11 // pred_fallthru
          _
        // Predicated region
        $region17: #{linear_norm_prepared.1} parent=11 // pred_check
          %p136 = pneg %p81
        $region18: #{linear_norm_prepared.1} parent=11 // pred_check_branch
          %138 = sbr.rel (%p136) target = $region20
        $region19: #{linear_norm_prepared.1} parent=11 // pred_region
          _
        $region20: #{linear_norm_prepared.1} parent=11 // pred_fallthru
          _
      $region12: #{linear_norm_prepared.1} parent=5 // pred_fallthru
        _
      %p139 = scmp.lt.s32.totalorder %s13, 2
      // Predicated region
      $region21: #{linear_norm_prepared.1} parent=5 // pred_check
        %p140 = pneg %p139
      $region22: #{linear_norm_prepared.1} parent=5 // pred_check_branch
        %142 = sbr.rel (%p140) target = $region24
      $region23: #{linear_norm_prepared.1} parent=5 // pred_region
        // Predicated region
        $region25: #{linear_norm_prepared.1} parent=23 // pred_check
          %p143 = pneg %p33
        $region26: #{linear_norm_prepared.1} parent=23 // pred_check_branch
          %145 = sbr.rel (%p143) target = $region28
        $region27: #{linear_norm_prepared.1} parent=23 // pred_region
          %s146 = sand.u32 %s23, 1
          %s147 = scalar_lea.sflag [#allocation3], %s146
          %s148 = sand.u32 %s23, 1
          %s149 = smul.addr %s148, 8
          %s150 = scalar_lea.vmem [#allocation2], %s149
          %152 = vsyncadd %s147, 0
          %s153 = smul.addr %s13, 8
          %s154 = scalar_lea.hbm %s0, %s153
          %s156 = sshll.u32 %s154, 4
          %s157 = int_to_ptr.hbm [resolvable:$true] %s156
          %s158 = sshll.u32 %s150, 4
          %s159 = int_to_ptr.vmem [resolvable:$true] %s158
          %161 = dma.hbm_to_vmem [thread:$0]  %s157, 128, %s159, %s147
        $region28: #{linear_norm_prepared.1} parent=23 // pred_fallthru
          _
      $region24: #{linear_norm_prepared.1} parent=5 // pred_fallthru
        _
      %p162 = scmp.le.s32.totalorder 1, %s13
      %p163 = scmp.lt.s32.totalorder %s13, 3
      %p164 = pnand %p162, %p163
      %p165 = pneg %p164
      // Predicated region
      $region29: #{linear_norm_prepared.1} parent=5 // pred_check
        _
      $region30: #{linear_norm_prepared.1} parent=5 // pred_check_branch
        %167 = sbr.rel (%p164) target = $region32
      $region31: #{linear_norm_prepared.1} parent=5 // pred_region
        %s168 = ssub.s32 %s13, 1
        %s169 = sand.u32 %s26, 1
        %s170 = scalar_lea.sflag [#allocation3], %s169
        %s171 = sand.u32 %s26, 1
        %s172 = smul.addr %s171, 8
        %s173 = scalar_lea.vmem [#allocation2], %s172
        // Predicated region
        $region33: #{linear_norm_prepared.1} parent=31 // pred_check
          %p174 = pneg %p39
        $region34: #{linear_norm_prepared.1} parent=31 // pred_check_branch
          %176 = sbr.rel (%p174) target = $region36
        $region35: #{linear_norm_prepared.1} parent=31 // pred_region
          %178 = dma.done %s170, 128
        $region36: #{linear_norm_prepared.1} parent=31 // pred_fallthru
          _
        // Predicated region
        $region37: #{linear_norm_prepared.1} parent=31 // pred_check
          %p179 = pneg %p60
        $region38: #{linear_norm_prepared.1} parent=31 // pred_check_branch
          %181 = sbr.rel (%p179) target = $region40
        $region39: #{linear_norm_prepared.1} parent=31 // pred_region
          %183 = dma.done [#allocation5], 512
        $region40: #{linear_norm_prepared.1} parent=31 // pred_fallthru
          _
        %s184 = sand.u32 %s26, 1
        %s185 = scalar_lea.sflag [#allocation3], %s184
        %s186 = sand.u32 %s26, 1
        %s187 = smul.addr %s186, 8
        %s188 = scalar_lea.vmem [#allocation2], %s187
        %p189 = pneg %p39
        %p190 = pneg %p36
        %p191 = pneg %p60
        %p192 = pneg %p57
        %p193 = pneg %p81
        %p194 = pneg %p78
        %p195 = pneg %p107
        %p196 = pneg %p104
        %p197 = scmp.lt.s32.totalorder %s18, 1
        %s198 = scalar_select %p197, %s18, 1
        %s199 = smul.addr %s198, 8
        %s200 = scalar_lea.vmem %s3, %s199
        %p201 = scmp.lt.s32.totalorder %s18, 1
        %s202 = scalar_select %p201, %s18, 1
        %s203 = smul.addr %s202, 8
        %s204 = scalar_lea.vmem %s3, %s203
        %v205 = vld [vmem:[%s173] sm:$0xff]
        %v206 = vld [vmem:[#allocation4] sm:$0xff]
        %v207 = vld [vmem:[#allocation4 + $0x8] sm:$0xff]
        %v208 = vld [vmem:[#allocation4 + $0x10] sm:$0xff]
        %v209 = vld [vmem:[#allocation4 + $0x18] sm:$0xff]
        %v210 = vld [vmem:[%s2] sm:$0x1]
        %v212 = vperm.slane %v210, 0
        %vm214 = vcmask 261120
        %v216 = vsel %vm214, %v205, 0
        %218 = vmatpush.msra.mxu0 0.0
        %219 = vmatpush.msra.mxu0 0.0
        %220 = vmatpush.msra.mxu0 0.0
        %221 = vmatpush.msra.mxu0 0.0
        %222 = vmatpush.msra.mxu0 0.0
        %223 = vmatpush.msra.mxu0 0.0
        %224 = vmatpush.msra.mxu0 0.0
        %225 = vmatpush.msra.mxu0 0.0
        %226 = vmatpush.msra.mxu0 0.0
        %227 = vmatpush.msra.mxu0 0.0
        %228 = vmatpush.msra.mxu0 0.0
        %229 = vmatpush.msra.mxu0 0.0
        %v230 = vand.u32 %v209, 4294901760
        %231 = vmatpush.msra.mxu0 %v230
        %v232 = vand.u32 %v208, 4294901760
        %233 = vmatpush.msra.mxu0 %v232
        %v234 = vand.u32 %v207, 4294901760
        %235 = vmatpush.msra.mxu0 %v234
        %v236 = vand.u32 %v206, 4294901760
        %237 = vmatpush.msra.mxu0 %v236
        %v238 = vand.u32 %v216, 4294901760
        %v239 = vsub.f32 %v216, %v238
        %v240 = vand.u32 %v239, 4294901760
        %v241 = vsub.f32 %v239, %v240
        %v242 = vand.u32 %v241, 4294901760
        %243 = vmatmul.f32.gmra.mxu0 %v242
        %v244 = vpop.f32.mrf.mxu0
        %v245 = vadd.f32 %v212, %v244
        %246 = vdwg.mxu0
        %247 = vmatpush.msra.mxu0 0.0
        %248 = vmatpush.msra.mxu0 0.0
        %249 = vmatpush.msra.mxu0 0.0
        %250 = vmatpush.msra.mxu0 0.0
        %251 = vmatpush.msra.mxu0 0.0
        %252 = vmatpush.msra.mxu0 0.0
        %253 = vmatpush.msra.mxu0 0.0
        %254 = vmatpush.msra.mxu0 0.0
        %255 = vmatpush.msra.mxu0 0.0
        %256 = vmatpush.msra.mxu0 0.0
        %257 = vmatpush.msra.mxu0 0.0
        %258 = vmatpush.msra.mxu0 0.0
        %v259 = vand.u32 %v209, 4294901760
        %v260 = vsub.f32 %v209, %v259
        %v261 = vand.u32 %v260, 4294901760
        %v262 = vsub.f32 %v260, %v261
        %v263 = vand.u32 %v262, 4294901760
        %264 = vmatpush.msra.mxu0 %v263
        %v265 = vand.u32 %v208, 4294901760
        %v266 = vsub.f32 %v208, %v265
        %v267 = vand.u32 %v266, 4294901760
        %v268 = vsub.f32 %v266, %v267
        %v269 = vand.u32 %v268, 4294901760
        %270 = vmatpush.msra.mxu0 %v269
        %v271 = vand.u32 %v207, 4294901760
        %v272 = vsub.f32 %v207, %v271
        %v273 = vand.u32 %v272, 4294901760
        %v274 = vsub.f32 %v272, %v273
        %v275 = vand.u32 %v274, 4294901760
        %276 = vmatpush.msra.mxu0 %v275
        %v277 = vand.u32 %v206, 4294901760
        %v278 = vsub.f32 %v206, %v277
        %v279 = vand.u32 %v278, 4294901760
        %v280 = vsub.f32 %v278, %v279
        %v281 = vand.u32 %v280, 4294901760
        %282 = vmatpush.msra.mxu0 %v281
        %v283 = vand.u32 %v216, 4294901760
        %284 = vmatmul.f32.gmra.mxu0 %v283
        %v285 = vpop.f32.mrf.mxu0
        %v286 = vadd.f32 %v245, %v285
        %287 = vdwg.mxu0
        %288 = vmatpush.msra.mxu0 0.0
        %289 = vmatpush.msra.mxu0 0.0
        %290 = vmatpush.msra.mxu0 0.0
        %291 = vmatpush.msra.mxu0 0.0
        %292 = vmatpush.msra.mxu0 0.0
        %293 = vmatpush.msra.mxu0 0.0
        %294 = vmatpush.msra.mxu0 0.0
        %295 = vmatpush.msra.mxu0 0.0
        %296 = vmatpush.msra.mxu0 0.0
        %297 = vmatpush.msra.mxu0 0.0
        %298 = vmatpush.msra.mxu0 0.0
        %299 = vmatpush.msra.mxu0 0.0
        %v300 = vand.u32 %v209, 4294901760
        %v301 = vsub.f32 %v209, %v300
        %302 = vmatpush.msra.mxu0 %v301
        %v303 = vand.u32 %v208, 4294901760
        %v304 = vsub.f32 %v208, %v303
        %305 = vmatpush.msra.mxu0 %v304
        %v306 = vand.u32 %v207, 4294901760
        %v307 = vsub.f32 %v207, %v306
        %308 = vmatpush.msra.mxu0 %v307
        %v309 = vand.u32 %v206, 4294901760
        %v310 = vsub.f32 %v206, %v309
        %311 = vmatpush.msra.mxu0 %v310
        %v312 = vand.u32 %v216, 4294901760
        %v313 = vsub.f32 %v216, %v312
        %314 = vmatmul.f32.gmra.mxu0 %v313
        %v315 = vpop.f32.mrf.mxu0
        %v316 = vadd.f32 %v286, %v315
        %317 = vdwg.mxu0
        %318 = vmatpush.msra.mxu0 0.0
        %319 = vmatpush.msra.mxu0 0.0
        %320 = vmatpush.msra.mxu0 0.0
        %321 = vmatpush.msra.mxu0 0.0
        %322 = vmatpush.msra.mxu0 0.0
        %323 = vmatpush.msra.mxu0 0.0
        %324 = vmatpush.msra.mxu0 0.0
        %325 = vmatpush.msra.mxu0 0.0
        %326 = vmatpush.msra.mxu0 0.0
        %327 = vmatpush.msra.mxu0 0.0
        %328 = vmatpush.msra.mxu0 0.0
        %329 = vmatpush.msra.mxu0 0.0
        %v330 = vand.u32 %v209, 4294901760
        %331 = vmatpush.msra.mxu0 %v330
        %v332 = vand.u32 %v208, 4294901760
        %333 = vmatpush.msra.mxu0 %v332
        %v334 = vand.u32 %v207, 4294901760
        %335 = vmatpush.msra.mxu0 %v334
        %v336 = vand.u32 %v206, 4294901760
        %337 = vmatpush.msra.mxu0 %v336
        %v338 = vand.u32 %v216, 4294901760
        %v339 = vsub.f32 %v216, %v338
        %v340 = vand.u32 %v339, 4294901760
        %341 = vmatmul.f32.gmra.mxu0 %v340
        %v342 = vpop.f32.mrf.mxu0
        %v343 = vadd.f32 %v316, %v342
        %344 = vdwg.mxu0
        %345 = vmatpush.msra.mxu0 0.0
        %346 = vmatpush.msra.mxu0 0.0
        %347 = vmatpush.msra.mxu0 0.0
        %348 = vmatpush.msra.mxu0 0.0
        %349 = vmatpush.msra.mxu0 0.0
        %350 = vmatpush.msra.mxu0 0.0
        %351 = vmatpush.msra.mxu0 0.0
        %352 = vmatpush.msra.mxu0 0.0
        %353 = vmatpush.msra.mxu0 0.0
        %354 = vmatpush.msra.mxu0 0.0
        %355 = vmatpush.msra.mxu0 0.0
        %356 = vmatpush.msra.mxu0 0.0
        %v357 = vand.u32 %v209, 4294901760
        %v358 = vsub.f32 %v209, %v357
        %v359 = vand.u32 %v358, 4294901760
        %360 = vmatpush.msra.mxu0 %v359
        %v361 = vand.u32 %v208, 4294901760
        %v362 = vsub.f32 %v208, %v361
        %v363 = vand.u32 %v362, 4294901760
        %364 = vmatpush.msra.mxu0 %v363
        %v365 = vand.u32 %v207, 4294901760
        %v366 = vsub.f32 %v207, %v365
        %v367 = vand.u32 %v366, 4294901760
        %368 = vmatpush.msra.mxu0 %v367
        %v369 = vand.u32 %v206, 4294901760
        %v370 = vsub.f32 %v206, %v369
        %v371 = vand.u32 %v370, 4294901760
        %372 = vmatpush.msra.mxu0 %v371
        %v373 = vand.u32 %v216, 4294901760
        %374 = vmatmul.f32.gmra.mxu0 %v373
        %v375 = vpop.f32.mrf.mxu0
        %v376 = vadd.f32 %v343, %v375
        %377 = vdwg.mxu0
        %378 = vmatpush.msra.mxu0 0.0
        %379 = vmatpush.msra.mxu0 0.0
        %380 = vmatpush.msra.mxu0 0.0
        %381 = vmatpush.msra.mxu0 0.0
        %382 = vmatpush.msra.mxu0 0.0
        %383 = vmatpush.msra.mxu0 0.0
        %384 = vmatpush.msra.mxu0 0.0
        %385 = vmatpush.msra.mxu0 0.0
        %386 = vmatpush.msra.mxu0 0.0
        %387 = vmatpush.msra.mxu0 0.0
        %388 = vmatpush.msra.mxu0 0.0
        %389 = vmatpush.msra.mxu0 0.0
        %v390 = vand.u32 %v209, 4294901760
        %391 = vmatpush.msra.mxu0 %v390
        %v392 = vand.u32 %v208, 4294901760
        %393 = vmatpush.msra.mxu0 %v392
        %v394 = vand.u32 %v207, 4294901760
        %395 = vmatpush.msra.mxu0 %v394
        %v396 = vand.u32 %v206, 4294901760
        %397 = vmatpush.msra.mxu0 %v396
        %v398 = vand.u32 %v216, 4294901760
        %399 = vmatmul.f32.gmra.mxu0 %v398
        %v400 = vpop.f32.mrf.mxu0
        %v401 = vadd.f32 %v376, %v400
        %402 = vdwg.mxu0
        %403 = vst [vmem:[%s204] sm:$0xff] %v401
        %p404 = scmp.lt.s32.totalorder %s18, 1
        %s405 = scalar_select %p404, %s18, 1
        %s406 = smul.addr %s405, 8
        %s407 = scalar_lea.vmem %s3, %s406
        // Predicated region
        $region41: #{linear_norm_prepared.1} parent=31 // pred_check
          %p408 = pneg %p104
        $region42: #{linear_norm_prepared.1} parent=31 // pred_check_branch
          %410 = sbr.rel (%p408) target = $region44
        $region43: #{linear_norm_prepared.1} parent=31 // pred_region
          _
        $region44: #{linear_norm_prepared.1} parent=31 // pred_fallthru
          _
      $region32: #{linear_norm_prepared.1} parent=5 // pred_fallthru
        _
      %p411 = scmp.le.s32.totalorder 2, %s13
      // Predicated region
      $region45: #{linear_norm_prepared.1} parent=5 // pred_check
        %p412 = pneg %p411
      $region46: #{linear_norm_prepared.1} parent=5 // pred_check_branch
        %414 = sbr.rel (%p412) target = $region48
      $region47: #{linear_norm_prepared.1} parent=5 // pred_region
        %s415 = ssub.s32 %s13, 2
        // Predicated region
        $region49: #{linear_norm_prepared.1} parent=47 // pred_check
          %p416 = pneg %p110
        $region50: #{linear_norm_prepared.1} parent=47 // pred_check_branch
          %418 = sbr.rel (%p416) target = $region52
        $region51: #{linear_norm_prepared.1} parent=47 // pred_region
          %p419 = scmp.lt.s32.totalorder %s19, 1
          %s420 = scalar_select %p419, %s19, 1
          %s421 = smul.addr %s420, 8
          %s422 = scalar_lea.vmem %s3, %s421
        $region52: #{linear_norm_prepared.1} parent=47 // pred_fallthru
          _
      $region48: #{linear_norm_prepared.1} parent=5 // pred_fallthru
        _
    $region6: #{linear_norm_prepared.1} parent=1 // loop_footer
      %s17 = sadd.s32 1, %s13
    $region7: #{linear_norm_prepared.1} parent=1 // loop_footer_branch
      %12 = sbr.rel target = $region3
    $region8: #{linear_norm_prepared.1} parent=1 // loop_exit
      _
    %423 = vsyncpa [#allocation3], 1
    %s424 = scalar_lea.sflag [#allocation3], 1
    %425 = vsyncpa %s424, 1
    %426 = vsyncpa [#allocation5], 1

</llo_original>
